<compile_context>
chip_gen: v7x
topology: tpu7x:2x2x1
jax: 0.10.0
libtpu: 0.0.40
codegen_flags: <defaults>
</compile_context>

<pallas_src>
import functools

import jax
import jax.numpy as jnp
from jax.experimental import pallas as pl
from jax.experimental.pallas import tpu as pltpu


# --------------- fused single-pass kernel (pool -> excite -> scale) ---------

def _se_fused_kernel(x_ref, w1t_ref, b1_ref, w2_ref, b2_ref, o_ref, *, inv_hw):
    # x_ref block: (Bt, C, HW).  Params are small, VMEM-resident arrays.
    # Squeeze: global average pool over the full-extent spatial lanes.
    pooled = jnp.sum(x_ref[...], axis=-1, keepdims=True) * inv_hw      # (Bt, C, 1)

    # Excitation on the VPU/XLU (tiny N=Bt mat-vecs; no MXU round-trip):
    #   h[b, cr] = sum_c w1[cr, c] * pooled[b, c] + b1[cr]
    h = jnp.sum(w1t_ref[...] * pooled, axis=1, keepdims=True) + b1_ref[...]   # (Bt, 1, Cr)
    h = jnp.maximum(h, 0.0)
    #   s[b, c]  = sum_cr w2[c, cr] * h[b, cr] + b2[c]
    s = jnp.sum(w2_ref[...] * h, axis=-1, keepdims=True) + b2_ref[...]        # (Bt, C, 1)
    s = jax.nn.sigmoid(s)

    # Scale: re-read x_ref (don't keep the big tile live across the chain).
    o_ref[...] = x_ref[...] * s


# --------------- two-phase fallback (large C*HW / small VMEM) ---------------

def _gate_kernel(x_ref, w1t_ref, b1_ref, w2_ref, b2_ref, g_ref, acc_ref, *,
                 hw, inv_hw):
    t = pl.program_id(1)

    @pl.when(t == 0)
    def _():
        acc_ref[...] = jnp.zeros_like(acc_ref)

    # Mask the (possibly out-of-bounds) tail of the last spatial tile.
    thw = x_ref.shape[-1]
    lane = jax.lax.broadcasted_iota(jnp.int32, x_ref.shape, dimension=2)
    valid = (t * thw + lane) < hw
    acc_ref[...] += jnp.sum(jnp.where(valid, x_ref[...], 0.0),
                            axis=-1, keepdims=True)

    @pl.when(t == pl.num_programs(1) - 1)
    def _():
        pooled = acc_ref[...] * inv_hw                                     # (1, C, 1)
        h = jnp.sum(w1t_ref[...] * pooled, axis=1, keepdims=True) + b1_ref[...]
        h = jnp.maximum(h, 0.0)                                            # (1, 1, Cr)
        s = jnp.sum(w2_ref[...] * h, axis=-1, keepdims=True) + b2_ref[...]
        g_ref[...] = jax.nn.sigmoid(s)                                     # (1, C, 1)


def _scale_kernel(x_ref, g_ref, o_ref):
    o_ref[...] = x_ref[...] * g_ref[...]


# --------------------------------- wrapper ----------------------------------

def _round_up(v, m):
    return ((v + m - 1) // m) * m


def _round_down(v, m):
    return max(m, (v // m) * m)


def _vmem_budget_bytes():
    # Generation-aware budget (v5e/v6e: 128 MiB physical, v7x: 64 MiB).
    try:
        cap = int(pltpu.get_tpu_info().vmem_capacity_bytes)
    except Exception:
        cap = 64 << 20  # conservative (v7x-sized) fallback
    return max(16 << 20, (cap * 3) // 4)


def attention_module(x_nchw, w1, b1, w2, b2):
    """Squeeze-Excitation forward.

    x_nchw: (B, C, H, W) float32
    w1: (C//r, C), b1: (C//r, 1)   -- fc1 (1x1 conv) params
    w2: (C, C//r), b2: (C, 1)      -- fc2 (1x1 conv) params
    Returns (B, C, H, W) float32.
    """
    B, C, H, W = x_nchw.shape
    Cr = w1.shape[0]
    HW = H * W
    inv_hw = float(1.0 / HW)

    # No host-side pad/slice: the last block dim is the full HW extent
    # (full-extent block dims are exempt from the 128-divisibility rule).
    x_flat = x_nchw.reshape(B, C, HW)

    # Layout-friendly params, prepared once outside the kernel.
    w1t = jnp.transpose(w1)        # (C, Cr): C on sublanes
    b1r = b1.reshape(1, Cr)        # lane-major
    w2m = w2                       # (C, Cr)
    b2c = b2.reshape(C, 1)         # matches the (C, 1) gate orientation

    param_bytes = (2 * C * Cr + Cr + C) * 4
    headroom = 2 << 20
    budget = _vmem_budget_bytes()

    # in + out blocks are double-buffered by the auto-pipeline -> 4 * block.
    fused_needed_1 = 4 * C * HW * 4 + param_bytes + headroom   # Bt = 1

    if fused_needed_1 <= budget:
        # ---- fused single pass: x read exactly once, written exactly once --
        # Batch images per grid step until the block is a few MB (small DMAs
        # underutilize HBM BW; per-step overhead dominates tiny blocks).
        target_block = 8 << 20
        Bt = 1
        for cand in range(2, B + 1):
            if B % cand:
                continue
            blk = cand * C * HW * 4
            if blk > target_block:
                continue
            if 4 * blk + param_bytes + headroom > budget:
                continue
            Bt = cand
        needed = 4 * Bt * C * HW * 4 + param_bytes + headroom
        vmem_limit = int(min(max(needed, 16 << 20), budget))

        out_flat = pl.pallas_call(
            functools.partial(_se_fused_kernel, inv_hw=inv_hw),
            out_shape=jax.ShapeDtypeStruct((B, C, HW), jnp.float32),
            grid_spec=pltpu.PrefetchScalarGridSpec(
                num_scalar_prefetch=0,
                grid=(B // Bt,),
                in_specs=[
                    pl.BlockSpec((Bt, C, HW), lambda b: (b, 0, 0)),
                    # Constant index_maps -> params resident across steps.
                    pl.BlockSpec((C, Cr), lambda b: (0, 0)),
                    pl.BlockSpec((1, Cr), lambda b: (0, 0)),
                    pl.BlockSpec((C, Cr), lambda b: (0, 0)),
                    pl.BlockSpec((C, 1), lambda b: (0, 0)),
                ],
                out_specs=pl.BlockSpec((Bt, C, HW), lambda b: (b, 0, 0)),
            ),
            compiler_params=pltpu.CompilerParams(
                dimension_semantics=("parallel",),
                vmem_limit_bytes=vmem_limit,
            ),
            cost_estimate=pl.CostEstimate(
                flops=2 * B * C * HW + 4 * B * C * Cr,
                transcendentals=B * (C + Cr),
                bytes_accessed=2 * B * C * HW * 4 + param_bytes),
        )(x_flat, w1t, b1r, w2m, b2c)
        return out_flat.reshape(B, C, H, W)

    # ---- two-phase fallback: HW-tiled gate pass, then lane-tiled scale -----
    max_lanes_budget = max(128, (budget - param_bytes - headroom) // (16 * C))
    max_lanes_target = max(128, (4 << 20) // (4 * C))
    THW = min(_round_up(HW, 128),
              _round_down(min(max_lanes_budget, max_lanes_target), 128))
    nt = (HW + THW - 1) // THW
    vmem_limit = int(min(max(4 * C * THW * 4 + param_bytes + headroom, 16 << 20),
                         budget))

    gate = pl.pallas_call(
        functools.partial(_gate_kernel, hw=HW, inv_hw=inv_hw),
        out_shape=jax.ShapeDtypeStruct((B, C, 1), jnp.float32),
        grid_spec=pltpu.PrefetchScalarGridSpec(
            num_scalar_prefetch=0,
            grid=(B, nt),
            in_specs=[
                pl.BlockSpec((1, C, THW), lambda b, t: (b, 0, t)),
                pl.BlockSpec((C, Cr), lambda b, t: (0, 0)),
                pl.BlockSpec((1, Cr), lambda b, t: (0, 0)),
                pl.BlockSpec((C, Cr), lambda b, t: (0, 0)),
                pl.BlockSpec((C, 1), lambda b, t: (0, 0)),
            ],
            out_specs=pl.BlockSpec((1, C, 1), lambda b, t: (b, 0, 0)),
            scratch_shapes=[pltpu.VMEM((1, C, 1), jnp.float32)],
        ),
        compiler_params=pltpu.CompilerParams(
            dimension_semantics=("parallel", "arbitrary"),
            vmem_limit_bytes=vmem_limit,
        ),
        cost_estimate=pl.CostEstimate(
            flops=B * C * HW + 4 * B * C * Cr,
            transcendentals=B * (C + Cr),
            bytes_accessed=B * C * HW * 4 + B * C * 4 + param_bytes),
    )(x_flat, w1t, b1r, w2m, b2c)

    out_flat = pl.pallas_call(
        _scale_kernel,
        out_shape=jax.ShapeDtypeStruct((B, C, HW), jnp.float32),
        grid_spec=pltpu.PrefetchScalarGridSpec(
            num_scalar_prefetch=0,
            grid=(B, nt),
            in_specs=[
                pl.BlockSpec((1, C, THW), lambda b, t: (b, 0, t)),
                pl.BlockSpec((1, C, 1), lambda b, t: (b, 0, 0)),
            ],
            out_specs=pl.BlockSpec((1, C, THW), lambda b, t: (b, 0, t)),
        ),
        compiler_params=pltpu.CompilerParams(
            # Both axes parallel: keeps both v7x TensorCores busy even at B=1.
            dimension_semantics=("parallel", "parallel"),
            vmem_limit_bytes=vmem_limit,
        ),
        cost_estimate=pl.CostEstimate(
            flops=B * C * HW,
            transcendentals=0,
            bytes_accessed=2 * B * C * HW * 4 + B * C * 4),
    )(x_flat, gate)
    return out_flat.reshape(B, C, H, W)


def _reference(x, w1, b1, w2, b2):
    # Pure-JAX reference matching the PyTorch module.
    pooled = jnp.mean(x, axis=(2, 3))                          # (B, C)
    h = jnp.maximum(pooled @ w1.T + b1[:, 0], 0.0)             # (B, Cr)
    s = jax.nn.sigmoid(h @ w2.T + b2[:, 0])                    # (B, C)
    return x * s[:, :, None, None]


if __name__ == "__main__":
    B, C, H, W = 2, 4, 16, 16
    reduction = 2
    Cr = C // reduction

    key = jax.random.PRNGKey(0)
    kx, k1, k2, k3, k4 = jax.random.split(key, 5)

    x = jax.random.normal(kx, (B, C, H, W), dtype=jnp.float32)
    # Deterministic synthetic params (match Conv2d 1x1 weight/bias shapes).
    w1 = jax.random.normal(k1, (Cr, C), dtype=jnp.float32) * 0.1
    b1 = jax.random.normal(k2, (Cr, 1), dtype=jnp.float32) * 0.1
    w2 = jax.random.normal(k3, (C, Cr), dtype=jnp.float32) * 0.1
    b2 = jax.random.normal(k4, (C, 1), dtype=jnp.float32) * 0.1

    out = attention_module(x, w1, b1, w2, b2)
    out = jax.block_until_ready(out)

    ref = _reference(x, w1, b1, w2, b2)
    assert out.shape == (B, C, H, W)
    assert jnp.allclose(out, ref, atol=1e-5, rtol=1e-5)

    print("KERNEL_OK")
</pallas_src>

<mosaic_0001>
module attributes {stable_mosaic.version = 11 : i64} {
  func.func @_se_fused_kernel(%arg0: i32, %arg1: memref<2x4x256xf32, #tpu.memory_space<vmem>>, %arg2: memref<4x2xf32, #tpu.memory_space<vmem>>, %arg3: memref<1x2xf32, #tpu.memory_space<vmem>>, %arg4: memref<4x2xf32, #tpu.memory_space<vmem>>, %arg5: memref<4x1xf32, #tpu.memory_space<vmem>>, %arg6: memref<2x4x256xf32, #tpu.memory_space<vmem>>) attributes {dimension_semantics = [#tpu.dimension_semantics<parallel>], iteration_bounds = array<i64: 1>, scalar_prefetch = 0 : i64, scratch_operands = 0 : i64, tpu.core_type = #tpu.core_type<tc>, window_params = [{transform_indices = @transform_0, window_bounds = array<i64: 2, 4, 256>}, {pipeline_mode = #tpu.pipeline_mode<synchronous>, transform_indices = @transform_1, window_bounds = array<i64: 4, 2>}, {pipeline_mode = #tpu.pipeline_mode<synchronous>, transform_indices = @transform_2, window_bounds = array<i64: 1, 2>}, {pipeline_mode = #tpu.pipeline_mode<synchronous>, transform_indices = @transform_3, window_bounds = array<i64: 4, 2>}, {pipeline_mode = #tpu.pipeline_mode<synchronous>, transform_indices = @transform_4, window_bounds = array<i64: 4, 1>}, {transform_indices = @transform_5, window_bounds = array<i64: 2, 4, 256>}]} {
    %c0 = arith.constant 0 : index
    %c0_0 = arith.constant 0 : index
    %c0_1 = arith.constant 0 : index
    %0 = vector.load %arg1[%c0, %c0_0, %c0_1] : memref<2x4x256xf32, #tpu.memory_space<vmem>>, vector<2x4x256xf32>
    %cst = arith.constant dense<0.000000e+00> : vector<2x4xf32>
    %1 = vector.multi_reduction <add>, %0, %cst [2] : vector<2x4x256xf32> to vector<2x4xf32>
    %2 = vector.shape_cast %1 : vector<2x4xf32> to vector<2x4x1xf32>
    %cst_2 = arith.constant 3.906250e-03 : f32
    %3 = vector.broadcast %cst_2 : f32 to vector<2x4x1xf32>
    %4 = arith.mulf %2, %3 : vector<2x4x1xf32>
    %c0_3 = arith.constant 0 : index
    %c0_4 = arith.constant 0 : index
    %5 = vector.load %arg2[%c0_3, %c0_4] : memref<4x2xf32, #tpu.memory_space<vmem>>, vector<4x2xf32>
    %6 = vector.shape_cast %5 : vector<4x2xf32> to vector<1x4x2xf32>
    %7 = vector.broadcast %6 : vector<1x4x2xf32> to vector<2x4x2xf32>
    %8 = vector.broadcast %4 : vector<2x4x1xf32> to vector<2x4x2xf32>
    %9 = arith.mulf %7, %8 : vector<2x4x2xf32>
    %cst_5 = arith.constant dense<0.000000e+00> : vector<2x2xf32>
    %10 = vector.multi_reduction <add>, %9, %cst_5 [1] : vector<2x4x2xf32> to vector<2x2xf32>
    %11 = vector.shape_cast %10 : vector<2x2xf32> to vector<2x1x2xf32>
    %c0_6 = arith.constant 0 : index
    %c0_7 = arith.constant 0 : index
    %12 = vector.load %arg3[%c0_6, %c0_7] : memref<1x2xf32, #tpu.memory_space<vmem>>, vector<1x2xf32>
    %13 = vector.shape_cast %12 : vector<1x2xf32> to vector<1x1x2xf32>
    %14 = vector.broadcast %13 : vector<1x1x2xf32> to vector<2x1x2xf32>
    %15 = arith.addf %11, %14 : vector<2x1x2xf32>
    %cst_8 = arith.constant 0.000000e+00 : f32
    %16 = vector.broadcast %cst_8 : f32 to vector<2x1x2xf32>
    %17 = arith.maximumf %15, %16 : vector<2x1x2xf32>
    %c0_9 = arith.constant 0 : index
    %c0_10 = arith.constant 0 : index
    %18 = vector.load %arg4[%c0_9, %c0_10] : memref<4x2xf32, #tpu.memory_space<vmem>>, vector<4x2xf32>
    %19 = vector.shape_cast %18 : vector<4x2xf32> to vector<1x4x2xf32>
    %20 = vector.broadcast %19 : vector<1x4x2xf32> to vector<2x4x2xf32>
    %21 = vector.broadcast %17 : vector<2x1x2xf32> to vector<2x4x2xf32>
    %22 = arith.mulf %20, %21 : vector<2x4x2xf32>
    %cst_11 = arith.constant dense<0.000000e+00> : vector<2x4xf32>
    %23 = vector.multi_reduction <add>, %22, %cst_11 [2] : vector<2x4x2xf32> to vector<2x4xf32>
    %24 = vector.shape_cast %23 : vector<2x4xf32> to vector<2x4x1xf32>
    %c0_12 = arith.constant 0 : index
    %c0_13 = arith.constant 0 : index
    %25 = vector.load %arg5[%c0_12, %c0_13] : memref<4x1xf32, #tpu.memory_space<vmem>>, vector<4x1xf32>
    %26 = vector.shape_cast %25 : vector<4x1xf32> to vector<1x4x1xf32>
    %27 = vector.broadcast %26 : vector<1x4x1xf32> to vector<2x4x1xf32>
    %28 = arith.addf %24, %27 : vector<2x4x1xf32>
    %29 = arith.negf %28 : vector<2x4x1xf32>
    %30 = math.exp %29 : vector<2x4x1xf32>
    %cst_14 = arith.constant 1.000000e+00 : f32
    %31 = vector.broadcast %cst_14 : f32 to vector<2x4x1xf32>
    %32 = arith.addf %31, %30 : vector<2x4x1xf32>
    %33 = arith.divf %31, %32 : vector<2x4x1xf32>
    %c0_15 = arith.constant 0 : index
    %c0_16 = arith.constant 0 : index
    %c0_17 = arith.constant 0 : index
    %34 = vector.load %arg1[%c0_15, %c0_16, %c0_17] : memref<2x4x256xf32, #tpu.memory_space<vmem>>, vector<2x4x256xf32>
    %35 = vector.broadcast %33 : vector<2x4x1xf32> to vector<2x4x256xf32>
    %36 = arith.mulf %34, %35 : vector<2x4x256xf32>
    %c0_18 = arith.constant 0 : index
    %c0_19 = arith.constant 0 : index
    %c0_20 = arith.constant 0 : index
    %37 = vector.load %arg6[%c0_18, %c0_19, %c0_20] : memref<2x4x256xf32, #tpu.memory_space<vmem>>, vector<2x4x256xf32>
    tpu.vector_store %arg6[%c0_18, %c0_19, %c0_20], %36 {strides = array<i32>} : memref<2x4x256xf32, #tpu.memory_space<vmem>>, vector<2x4x256xf32>,
    return
  }
  func.func @transform_0(%arg0: i32) -> (i32, i32, i32) {
    %c0_i32 = arith.constant 0 : i32
    %c0_i32_0 = arith.constant 0 : i32
    %c0_i32_1 = arith.constant 0 : i32
    return %arg0, %c0_i32, %c0_i32_0 : i32, i32, i32
  }
  func.func @transform_1(%arg0: i32) -> (i32, i32) {
    %c0_i32 = arith.constant 0 : i32
    %c0_i32_0 = arith.constant 0 : i32
    %c0_i32_1 = arith.constant 0 : i32
    return %c0_i32, %c0_i32_0 : i32, i32
  }
  func.func @transform_2(%arg0: i32) -> (i32, i32) {
    %c0_i32 = arith.constant 0 : i32
    %c0_i32_0 = arith.constant 0 : i32
    %c0_i32_1 = arith.constant 0 : i32
    return %c0_i32, %c0_i32_0 : i32, i32
  }
  func.func @transform_3(%arg0: i32) -> (i32, i32) {
    %c0_i32 = arith.constant 0 : i32
    %c0_i32_0 = arith.constant 0 : i32
    %c0_i32_1 = arith.constant 0 : i32
    return %c0_i32, %c0_i32_0 : i32, i32
  }
  func.func @transform_4(%arg0: i32) -> (i32, i32) {
    %c0_i32 = arith.constant 0 : i32
    %c0_i32_0 = arith.constant 0 : i32
    %c0_i32_1 = arith.constant 0 : i32
    return %c0_i32, %c0_i32_0 : i32, i32
  }
  func.func @transform_5(%arg0: i32) -> (i32, i32, i32) {
    %c0_i32 = arith.constant 0 : i32
    %c0_i32_0 = arith.constant 0 : i32
    %c0_i32_1 = arith.constant 0 : i32
    return %arg0, %c0_i32, %c0_i32_0 : i32, i32, i32
  }
}

</mosaic_0001>

<llo_original>
// kernel: tpu_custom_call.1
$region0: #{tpu_custom_call.1}
  #allocation0 [shape = 'u32[]', space=smem, size = 0x4, offset = 0x4, fixed_abs, tag = 'smem constant byte address 0x4 - core index']
  #allocation1 [shape = 'u32[144,128]{1,0:T(1,128)}', space=vmem, size = 0x12000, scoped, tag = 'internal scratch']
  %s0 = inlined_call_operand.vmem [shape: f32[2,4,256], index: 0, kind: input, shape index: {}]
  %s1 = inlined_call_operand.vmem [shape: f32[4,2], index: 1, kind: input, shape index: {}]
  %s2 = inlined_call_operand.vmem [shape: f32[1,2], index: 2, kind: input, shape index: {}]
  %s3 = inlined_call_operand.vmem [shape: f32[4,2], index: 3, kind: input, shape index: {}]
  %s4 = inlined_call_operand.vmem [shape: f32[4,1], index: 4, kind: input, shape index: {}]
  %s5 = inlined_call_operand.hbm [shape: f32[2,4,256], index: 5, kind: output, shape index: {}]
  %s6 = sld [smem:[#allocation0]]
  $region30: #{tpu_custom_call.1} parent=0
    _
  %s8 = ssub.s32 1, %s6
  %s9 = scalar_select 0, %s8, %s6
  $region1: #{tpu_custom_call.1} parent=0
    #allocation2 [shape = 'u8[8192]{0}', space=vmem, size = 0x2000, scoped, tag = 'output window, operand 0, single buffered']
    #allocation3 [shape = 's32[1]{0}', space=sflag, size = 0x4, scoped, tag = 'scoped memory for tpu_custom_call.1']
    %10 = vsyncpa [#allocation3], 0
    // Predicated region
    $region2: #{tpu_custom_call.1} parent=1 // pred_check
      _
    $region3: #{tpu_custom_call.1} parent=1 // pred_check_branch
      %12 = sbr.rel (0) target = $region5
    $region4: #{tpu_custom_call.1} parent=1 // pred_region
      _
    $region5: #{tpu_custom_call.1} parent=1 // pred_fallthru
      _
    // Predicated region
    $region6: #{tpu_custom_call.1} parent=1 // pred_check
      _
    $region7: #{tpu_custom_call.1} parent=1 // pred_check_branch
      %14 = sbr.rel (0) target = $region9
    $region8: #{tpu_custom_call.1} parent=1 // pred_region
      _
    $region9: #{tpu_custom_call.1} parent=1 // pred_fallthru
      _
    // Predicated region
    $region10: #{tpu_custom_call.1} parent=1 // pred_check
      _
    $region11: #{tpu_custom_call.1} parent=1 // pred_check_branch
      %16 = sbr.rel (0) target = $region13
    $region12: #{tpu_custom_call.1} parent=1 // pred_region
      _
    $region13: #{tpu_custom_call.1} parent=1 // pred_fallthru
      _
    // Predicated region
    $region14: #{tpu_custom_call.1} parent=1 // pred_check
      _
    $region15: #{tpu_custom_call.1} parent=1 // pred_check_branch
      %18 = sbr.rel (0) target = $region17
    $region16: #{tpu_custom_call.1} parent=1 // pred_region
      _
    $region17: #{tpu_custom_call.1} parent=1 // pred_fallthru
      _
    // Predicated region
    $region18: #{tpu_custom_call.1} parent=1 // pred_check
      _
    $region19: #{tpu_custom_call.1} parent=1 // pred_check_branch
      %20 = sbr.rel (0) target = $region21
    $region20: #{tpu_custom_call.1} parent=1 // pred_region
      _
    $region21: #{tpu_custom_call.1} parent=1 // pred_fallthru
      _
    %v21 = vld [vmem:[%s0] sm:$0xff]
    %v22 = vld [vmem:[%s0 + $0x8] sm:$0xff]
    %v25 = vcombine.high %v21, %v21
    %v26 = vcombine.high %v22, %v22
    %vm29 = vcmask 1043456
    %v30 = vsel %vm29, %v21, 0.0
    %v31 = vsel %vm29, %v25, 0.0
    %v32 = vadd.f32 %v30, %v31
    %33 = vadd.xlane.f32.xlu0 %v32
    %v34 = vpop.xlane.xlu0 %33
    %v35 = vsel %vm29, %v22, 0.0
    %v36 = vsel %vm29, %v26, 0.0
    %v37 = vadd.f32 %v35, %v36
    %38 = vadd.xlane.f32.xlu0 %v37
    %v39 = vpop.xlane.xlu0 %38
    %v40 = vmul.f32 %v34, 0.00390625
    %v41 = vmul.f32 %v39, 0.00390625
    %v42 = vld [vmem:[%s1] sm:$0xf]
    %v43 = vmul.f32 %v42, %v40
    %v44 = vmul.f32 %v42, %v41
    %vm45 = vcmask 11264
    %v46 = vsel %vm45, %v43, 0.0
    %v47 = vrot.slane %v46, 4
    %v48 = vadd.f32 %v46, %v47
    %v49 = vrot.slane %v48, 2
    %v50 = vadd.f32 %v48, %v49
    %v51 = vrot.slane %v50, 1
    %v52 = vadd.f32 %v50, %v51
    %v53 = vsel %vm45, %v44, 0.0
    %v54 = vrot.slane %v53, 4
    %v55 = vadd.f32 %v53, %v54
    %v56 = vrot.slane %v55, 2
    %v57 = vadd.f32 %v55, %v56
    %v58 = vrot.slane %v57, 1
    %v59 = vadd.f32 %v57, %v58
    %v60 = vld [vmem:[%s2] sm:$0x1]
    %v61 = vadd.f32 %v52, %v60
    %v62 = vadd.f32 %v59, %v60
    %v63 = vmax.f32 %v61, 0.0
    %v64 = vmax.f32 %v62, 0.0
    %v65 = vld [vmem:[%s3] sm:$0xf]
    %v66 = vlaneseq
    %v67 = vshrl.u32 %v66, 7
    %v68 = vsub.s32 0, %v67
    %v69 = vrot.slane %v63, %v68
    %v70 = vlaneseq
    %v71 = vshrl.u32 %v70, 7
    %v72 = vsub.s32 0, %v71
    %v73 = vrot.slane %v64, %v72
    %v74 = vmul.f32 %v65, %v69
    %v75 = vmul.f32 %v65, %v73
    %v76 = vsel %vm45, %v74, 0.0
    %77 = vadd.xlane.f32.xlu0 %v76
    %v78 = vpop.xlane.xlu0 %77
    %v79 = vsel %vm45, %v75, 0.0
    %80 = vadd.xlane.f32.xlu0 %v79
    %v81 = vpop.xlane.xlu0 %80
    %v82 = vld [vmem:[%s4] sm:$0xf]
    %v83 = vadd.f32 %v78, %v82
    %v84 = vadd.f32 %v81, %v82
    %v85 = vxor.u32 %v83, 2147483648
    %v86 = vxor.u32 %v84, 2147483648
    %v87 = vmul.f32 %v85, 1.442695
    %v88 = vpow.pop %v87
    %v89 = vmul.f32 %v86, 1.442695
    %v90 = vpow.pop %v89
    %v91 = vadd.f32 %v88, 1.0
    %v92 = vadd.f32 %v90, 1.0
    %v93 = vrcp.pop %v91
    %v94 = vmul.f32 1.0, %v93
    %v95 = vrcp.pop %v92
    %v96 = vmul.f32 1.0, %v95
    %98 = vset.pattern.permute.xlu0 0
    %99 = vperm.xlu0 %98, %v94
    %v100 = vpop.permute.xlu0 %99
    %102 = vset.pattern.permute.xlu0 0
    %103 = vperm.xlu0 %102, %v96
    %v104 = vpop.permute.xlu0 %103
    %v106 = vunpack.c.l.s4 839922192
    %v107 = vunpack.c.0.s8 %v106
    %v108 = vlaneseq
    %v109 = vshrl.u32 %v108, 7
    %v110 = vsub.s32 %v107, %v109
    %v111 = vrot.slane %v100, %v110
    %v113 = vunpack.c.l.s4 839922192
    %v114 = vunpack.c.0.s8 %v113
    %v115 = vlaneseq
    %v116 = vshrl.u32 %v115, 7
    %v117 = vsub.s32 %v114, %v116
    %v118 = vrot.slane %v104, %v117
    %v121 = vmul.f32 %v21, %v111
    %v122 = vmul.f32 %v22, %v118
    %123 = vst [vmem:[#allocation2] sm:$0xff] %v121
    %124 = vst [vmem:[#allocation2 + $0x8] sm:$0xff] %v122
    // Predicated region
    $region22: #{tpu_custom_call.1} parent=1 // pred_check
      _
    $region23: #{tpu_custom_call.1} parent=1 // pred_check_branch
      %126 = sbr.rel (0) target = $region25
    $region24: #{tpu_custom_call.1} parent=1 // pred_region
      %s128 = ssub.s32 256, 256
      %129 = vsyncadd [#allocation3], %s128
      %s130 = sshll.u32 [#allocation2], 4
      %s131 = int_to_ptr.vmem [resolvable:$true] %s130
      %136 = dma.vmem_to_hbm [thread:$0]  %s131, 256, %s5, [#allocation3], 128, 128, 8
    $region25: #{tpu_custom_call.1} parent=1 // pred_fallthru
      _
    // Predicated region
    $region26: #{tpu_custom_call.1} parent=1 // pred_check
      _
    $region27: #{tpu_custom_call.1} parent=1 // pred_check_branch
      %138 = sbr.rel (0) target = $region29
    $region28: #{tpu_custom_call.1} parent=1 // pred_region
      %139 = dma.done [#allocation3], 256
    $region29: #{tpu_custom_call.1} parent=1 // pred_fallthru
      _
    %140 = vsyncpa [#allocation3], 1

</llo_original>
